<compile_context>
chip_gen: v7x
topology: tpu7x:2x2x1
jax: 0.10.0
libtpu: 0.0.40
codegen_flags: <defaults>
</compile_context>

<pallas_src>
import jax
import jax.numpy as jnp
from jax.experimental import pallas as pl
from jax.experimental.pallas import tpu as pltpu

EPS = 1e-9        # ieps_default in the reference codebase
_LANES = 128      # TPU vreg lane width
_MIB = 1 << 20


def _round_up(v, m):
    return ((v + m - 1) // m) * m


def _finish(x, d, ssq, n, o_ref):
    """Shared epilogue: unbiased std, guarded divide, sigmoid gate, store."""
    # torch.Tensor.std default: unbiased (Bessel's correction, ddof=1).
    # NOTE: H == 1 (n - 1 == 0) is unsupported, exactly like the PyTorch reference
    # which produces NaN there.
    std = jnp.sqrt(ssq * (1.0 / (n - 1)))
    s = std + EPS
    inv = pl.reciprocal(s, approx=True)   # EUP slot (free alongside VPU work)
    inv = inv * (2.0 - s * inv)           # one Newton step -> ~full f32 accuracy (needed for 2e-5)
    o_ref[...] = (jax.nn.sigmoid(x) * (d * inv)).astype(o_ref.dtype)


def _make_kernel(H, P):
    """Kernel body; P logical rows packed per physical row (P == 1 -> plain rows)."""
    n = H  # reduction length (features per logical row)

    if P == 1:
        def kernel(x_ref, o_ref):
            x = x_ref[...].astype(jnp.float32)
            mean = jnp.mean(x, axis=-1, keepdims=True)
            d = x - mean
            ssq = jnp.sum(d * d, axis=-1, keepdims=True)
            _finish(x, d, ssq, n, o_ref)
        return kernel

    def kernel(seg_ref, x_ref, o_ref):
        x = x_ref[...].astype(jnp.float32)
        # seg[i, j] = 1 iff lanes i and j belong to the same logical row.  Hoisted to a
        # host-built bf16 input with a constant index_map, so it is DMA'd once and
        # stays resident in VMEM across all grid steps.
        seg = seg_ref[...]

        def seg_sum(v):
            # Segmented per-logical-row sum, broadcast back to every lane, on the MXU.
            # Pinned precision: v = hi + lo with both halves in bf16 and seg exact in
            # bf16, so two single-pass bf16 matmuls (f32 accumulation) reproduce the f32
            # reduction to ~2^-18 relative error on every MXU generation.
            hi = v.astype(jnp.bfloat16)
            lo = (v - hi.astype(jnp.float32)).astype(jnp.bfloat16)
            return (jnp.dot(hi, seg, preferred_element_type=jnp.float32)
                    + jnp.dot(lo, seg, preferred_element_type=jnp.float32))

        mean = seg_sum(x) * (1.0 / n)
        d = x - mean
        ssq = seg_sum(d * d)
        _finish(x, d, ssq, n, o_ref)

    return kernel


def _vmem_capacity_bytes():
    """Physical per-core VMEM (v5e/v6e 128 MiB, v7x 64 MiB); conservative fallback."""
    try:
        return int(pltpu.get_tpu_info().vmem_capacity_bytes)
    except Exception:
        return 64 * _MIB


def _choose_block_rows(width, vmem_cap):
    """Byte-based tile sizing: target the f32 working tile, not a fixed row count."""
    # ~4 MiB f32 working tile on 128 MiB-VMEM parts, ~2.5 MiB on v7x's 64 MiB.  This
    # keeps the pipelined native-dtype buffers (f32 or bf16) in the measured 1-4 MiB
    # HBM-roofline plateau while leaving room for double-buffering + f32 temporaries.
    f32_tile_target = 4 * _MIB if vmem_cap >= 96 * _MIB else (5 * _MIB) // 2
    r = f32_tile_target // (width * 4)
    return max(16, (r // 16) * 16)


def swish_norm(x, *, block_rows=None):
    """Normalized Swish over the last axis. x: [..., H]."""
    orig_shape = x.shape
    H = orig_shape[-1]
    x2d = x.reshape(-1, H)
    R = x2d.shape[0]

    # Lane packing: P logical rows per 128-lane physical row when H < 128 divides 128,
    # so every load/store is full lane width (no masked vst.msk).
    P = 1
    if 1 < H < _LANES and _LANES % H == 0 and R % (_LANES // H) == 0:
        P = _LANES // H
    Rp = R // P
    W = P * H
    xp = x2d.reshape(Rp, W)

    itemsize = jnp.dtype(x.dtype).itemsize
    vmem_cap = _vmem_capacity_bytes()

    if block_rows is None:
        br = _choose_block_rows(W, vmem_cap)
        if br >= Rp:
            # Whole array fits one block.  If it is big enough to matter, split into
            # >= 2 grid steps so ("parallel",) can shard across v7x's two TensorCores
            # and the double-buffered pipeline can overlap.
            br = _round_up(pl.cdiv(Rp, 2), 16) if Rp >= 32 else Rp
    else:
        br = min(block_rows, Rp)

    # No padding copy: Pallas masks the tail block's out-of-bounds stores.  Safe only
    # because rows are fully independent (no cross-row reduction consumes the garbage).
    grid = (pl.cdiv(Rp, br),)

    # Generation-aware VMEM budget: double-buffered in+out tiles, a generous allowance
    # for f32 temporaries, the resident seg matrix, plus slack; capped at 3/4 of the
    # physical per-core VMEM (matters on v7x's 64 MiB parts).
    tile_native = br * W * itemsize
    tile_f32 = br * W * 4
    seg_bytes = (W * W * 2) if P > 1 else 0
    need = 4 * tile_native + 10 * tile_f32 + 2 * seg_bytes + 4 * _MIB
    vmem_limit = int(min(max(need, 32 * _MIB), (3 * vmem_cap) // 4))

    x_spec = pl.BlockSpec((br, W), lambda i: (i, 0))
    if P > 1:
        li = jnp.arange(W, dtype=jnp.int32) // H
        seg = (li[:, None] == li[None, :]).astype(jnp.bfloat16)  # exact 0/1 in bf16
        in_specs = [pl.BlockSpec((W, W), lambda i: (0, 0)),  # constant block -> DMA'd once
                    x_spec]
        args = (seg, xp)
    else:
        in_specs = [x_spec]
        args = (xp,)

    out = pl.pallas_call(
        _make_kernel(H, P),
        out_shape=jax.ShapeDtypeStruct((Rp, W), x.dtype),
        grid_spec=pltpu.PrefetchScalarGridSpec(
            num_scalar_prefetch=0,
            grid=grid,
            in_specs=in_specs,
            out_specs=pl.BlockSpec((br, W), lambda i: (i, 0)),
        ),
        compiler_params=pltpu.CompilerParams(
            dimension_semantics=("parallel",),   # megacore-shardable row grid
            vmem_limit_bytes=vmem_limit,
        ),
    )(*args)

    return out.reshape(orig_shape)


def swish_norm_ref(x):
    """Pure-JAX reference matching the PyTorch forward."""
    xf = x.astype(jnp.float32)
    mean = jnp.mean(xf, axis=-1, keepdims=True)
    std = jnp.std(xf, axis=-1, keepdims=True, ddof=1)
    norm_x = (xf - mean) / (std + EPS)
    return (jax.nn.sigmoid(xf) * norm_x).astype(x.dtype)


if __name__ == "__main__":
    key = jax.random.PRNGKey(0)

    # batch=2, seq=8, hidden=32 -> H < 128: lane-packed path (P = 4, MXU segmented sums)
    x = jax.random.normal(key, (2, 8, 32), dtype=jnp.float32)
    out = jax.block_until_ready(swish_norm(x))
    ref = swish_norm_ref(x)
    assert out.shape == x.shape and out.dtype == x.dtype
    assert jnp.allclose(out, ref, atol=2e-5, rtol=2e-5)

    # H >= 128 exercises the plain per-row reduction path (still lane-dense).
    x2 = jax.random.normal(jax.random.PRNGKey(1), (3, 7, 256), dtype=jnp.float32)
    out2 = jax.block_until_ready(swish_norm(x2))
    ref2 = swish_norm_ref(x2)
    assert out2.shape == x2.shape and out2.dtype == x2.dtype
    assert jnp.allclose(out2, ref2, atol=2e-5, rtol=2e-5)

    print("KERNEL_OK")
</pallas_src>

<mosaic_0001>
module attributes {stable_mosaic.version = 11 : i64} {
  func.func @kernel(%arg0: i32, %arg1: memref<128x128xbf16, #tpu.memory_space<vmem>>, %arg2: memref<4x128xf32, #tpu.memory_space<vmem>>, %arg3: memref<4x128xf32, #tpu.memory_space<vmem>>) attributes {dimension_semantics = [#tpu.dimension_semantics<parallel>], iteration_bounds = array<i64: 1>, scalar_prefetch = 0 : i64, scratch_operands = 0 : i64, tpu.core_type = #tpu.core_type<tc>, window_params = [{pipeline_mode = #tpu.pipeline_mode<synchronous>, transform_indices = @transform_0, window_bounds = array<i64: 128, 128>}, {transform_indices = @transform_1, window_bounds = array<i64: 4, 128>}, {transform_indices = @transform_2, window_bounds = array<i64: 4, 128>}]} {
    %c0 = arith.constant 0 : index
    %c0_0 = arith.constant 0 : index
    %0 = vector.load %arg2[%c0, %c0_0] : memref<4x128xf32, #tpu.memory_space<vmem>>, vector<4x128xf32>
    %c0_1 = arith.constant 0 : index
    %c0_2 = arith.constant 0 : index
    %1 = vector.load %arg1[%c0_1, %c0_2] : memref<128x128xbf16, #tpu.memory_space<vmem>>, vector<128x128xbf16>
    %2 = arith.truncf %0 : vector<4x128xf32> to vector<4x128xbf16>
    %3 = arith.extf %2 : vector<4x128xbf16> to vector<4x128xf32>
    %4 = arith.subf %0, %3 : vector<4x128xf32>
    %5 = arith.truncf %4 : vector<4x128xf32> to vector<4x128xbf16>
    %cst = arith.constant dense<0.000000e+00> : vector<4x128xf32>
    %6 = tpu.matmul %2, %1, %cst {dimension_numbers = #tpu.dot_dimension_numbers<[1], [0], [0], [1], [0, 0, 1, 1], [], []>} : vector<4x128xbf16>, vector<128x128xbf16>, vector<4x128xf32> -> vector<4x128xf32>
    %cst_3 = arith.constant dense<0.000000e+00> : vector<4x128xf32>
    %7 = tpu.matmul %5, %1, %cst_3 {dimension_numbers = #tpu.dot_dimension_numbers<[1], [0], [0], [1], [0, 0, 1, 1], [], []>} : vector<4x128xbf16>, vector<128x128xbf16>, vector<4x128xf32> -> vector<4x128xf32>
    %8 = arith.addf %6, %7 : vector<4x128xf32>
    %cst_4 = arith.constant 3.125000e-02 : f32
    %9 = vector.broadcast %cst_4 : f32 to vector<4x128xf32>
    %10 = arith.mulf %8, %9 : vector<4x128xf32>
    %11 = arith.subf %0, %10 : vector<4x128xf32>
    %12 = arith.mulf %11, %11 : vector<4x128xf32>
    %13 = arith.truncf %12 : vector<4x128xf32> to vector<4x128xbf16>
    %14 = arith.extf %13 : vector<4x128xbf16> to vector<4x128xf32>
    %15 = arith.subf %12, %14 : vector<4x128xf32>
    %16 = arith.truncf %15 : vector<4x128xf32> to vector<4x128xbf16>
    %cst_5 = arith.constant dense<0.000000e+00> : vector<4x128xf32>
    %17 = tpu.matmul %13, %1, %cst_5 {dimension_numbers = #tpu.dot_dimension_numbers<[1], [0], [0], [1], [0, 0, 1, 1], [], []>} : vector<4x128xbf16>, vector<128x128xbf16>, vector<4x128xf32> -> vector<4x128xf32>
    %cst_6 = arith.constant dense<0.000000e+00> : vector<4x128xf32>
    %18 = tpu.matmul %16, %1, %cst_6 {dimension_numbers = #tpu.dot_dimension_numbers<[1], [0], [0], [1], [0, 0, 1, 1], [], []>} : vector<4x128xbf16>, vector<128x128xbf16>, vector<4x128xf32> -> vector<4x128xf32>
    %19 = arith.addf %17, %18 : vector<4x128xf32>
    %cst_7 = arith.constant 0.0322580636 : f32
    %20 = vector.broadcast %cst_7 : f32 to vector<4x128xf32>
    %21 = arith.mulf %19, %20 : vector<4x128xf32>
    %22 = math.sqrt %21 : vector<4x128xf32>
    %cst_8 = arith.constant 9.99999971E-10 : f32
    %23 = vector.broadcast %cst_8 : f32 to vector<4x128xf32>
    %24 = arith.addf %22, %23 : vector<4x128xf32>
    %25 = tpu.reciprocal %24 {approx = true} : vector<4x128xf32> -> vector<4x128xf32>
    %26 = arith.mulf %24, %25 : vector<4x128xf32>
    %cst_9 = arith.constant 2.000000e+00 : f32
    %27 = vector.broadcast %cst_9 : f32 to vector<4x128xf32>
    %28 = arith.subf %27, %26 : vector<4x128xf32>
    %29 = arith.mulf %25, %28 : vector<4x128xf32>
    %30 = arith.negf %0 : vector<4x128xf32>
    %31 = math.exp %30 : vector<4x128xf32>
    %cst_10 = arith.constant 1.000000e+00 : f32
    %32 = vector.broadcast %cst_10 : f32 to vector<4x128xf32>
    %33 = arith.addf %32, %31 : vector<4x128xf32>
    %34 = arith.divf %32, %33 : vector<4x128xf32>
    %35 = arith.mulf %11, %29 : vector<4x128xf32>
    %36 = arith.mulf %34, %35 : vector<4x128xf32>
    %c0_11 = arith.constant 0 : index
    %c0_12 = arith.constant 0 : index
    %37 = vector.load %arg3[%c0_11, %c0_12] : memref<4x128xf32, #tpu.memory_space<vmem>>, vector<4x128xf32>
    tpu.vector_store %arg3[%c0_11, %c0_12], %36 {strides = array<i32>} : memref<4x128xf32, #tpu.memory_space<vmem>>, vector<4x128xf32>,
    return
  }
  func.func @transform_0(%arg0: i32) -> (i32, i32) {
    %c0_i32 = arith.constant 0 : i32
    %c0_i32_0 = arith.constant 0 : i32
    %c0_i32_1 = arith.constant 0 : i32
    return %c0_i32, %c0_i32_0 : i32, i32
  }
  func.func @transform_1(%arg0: i32) -> (i32, i32) {
    %c0_i32 = arith.constant 0 : i32
    %c0_i32_0 = arith.constant 0 : i32
    return %arg0, %c0_i32 : i32, i32
  }
  func.func @transform_2(%arg0: i32) -> (i32, i32) {
    %c0_i32 = arith.constant 0 : i32
    %c0_i32_0 = arith.constant 0 : i32
    return %arg0, %c0_i32 : i32, i32
  }
}

</mosaic_0001>

<llo_original>
// kernel: tpu_custom_call.1
$region0: #{tpu_custom_call.1}
  #allocation0 [shape = 'u32[]', space=smem, size = 0x4, offset = 0x4, fixed_abs, tag = 'smem constant byte address 0x4 - core index']
  #allocation1 [shape = 'u32[144,128]{1,0:T(1,128)}', space=vmem, size = 0x12000, scoped, tag = 'internal scratch']
  %s0 = inlined_call_operand.hbm [shape: bf16[128,128], index: 0, kind: input, shape index: {}]
  %s1 = inlined_call_operand.hbm [shape: f32[4,128], index: 1, kind: input, shape index: {}]
  %s2 = inlined_call_operand.hbm [shape: f32[4,128], index: 2, kind: output, shape index: {}]
  %s3 = sld [smem:[#allocation0]]
  $region26: #{tpu_custom_call.1} parent=0
    _
  %s5 = ssub.s32 1, %s3
  %s6 = scalar_select 0, %s5, %s3
  $region1: #{tpu_custom_call.1} parent=0
    #allocation2 [shape = 'u8[32768]{0}', space=vmem, size = 0x8000, scoped, tag = 'input window, operand 0, single buffered']
    #allocation3 [shape = 's32[1]{0}', space=sflag, size = 0x4, scoped, tag = 'scoped memory for tpu_custom_call.1']
    #allocation4 [shape = 's32[1]{0}', space=sflag, size = 0x4, scoped, tag = 'scoped memory for tpu_custom_call.1']
    #allocation5 [shape = 'u8[2048]{0}', space=vmem, size = 0x800, scoped, tag = 'input window, operand 1, single buffered']
    #allocation6 [shape = 's32[1]{0}', space=sflag, size = 0x4, scoped, tag = 'scoped memory for tpu_custom_call.1']
    #allocation7 [shape = 'u8[2048]{0}', space=vmem, size = 0x800, scoped, tag = 'output window, operand 0, single buffered']
    %7 = vsyncpa [#allocation3], 0
    %8 = vsyncpa [#allocation6], 0
    %9 = vsyncpa [#allocation4], 0
    // Predicated region
    $region2: #{tpu_custom_call.1} parent=1 // pred_check
      _
    $region3: #{tpu_custom_call.1} parent=1 // pred_check_branch
      %11 = sbr.rel (0) target = $region5
    $region4: #{tpu_custom_call.1} parent=1 // pred_region
      %s13 = ssub.s32 1024, 1024
      %14 = vsyncadd [#allocation3], %s13
      %s15 = sshll.u32 [#allocation2], 4
      %s16 = int_to_ptr.vmem [resolvable:$true] %s15
      %21 = dma.hbm_to_vmem [thread:$0]  %s0, 1024, %s16, [#allocation3], 64, 64, 4
    $region5: #{tpu_custom_call.1} parent=1 // pred_fallthru
      _
    // Predicated region
    $region6: #{tpu_custom_call.1} parent=1 // pred_check
      _
    $region7: #{tpu_custom_call.1} parent=1 // pred_check_branch
      %23 = sbr.rel (0) target = $region9
    $region8: #{tpu_custom_call.1} parent=1 // pred_region
      %s25 = ssub.s32 64, 64
      %26 = vsyncadd [#allocation6], %s25
      %s28 = sshll.u32 [#allocation5], 4
      %s29 = int_to_ptr.vmem [resolvable:$true] %s28
      %31 = dma.hbm_to_vmem [thread:$0]  %s1, 64, %s29, [#allocation6]
    $region9: #{tpu_custom_call.1} parent=1 // pred_fallthru
      _
    // Predicated region
    $region10: #{tpu_custom_call.1} parent=1 // pred_check
      _
    $region11: #{tpu_custom_call.1} parent=1 // pred_check_branch
      %33 = sbr.rel (0) target = $region13
    $region12: #{tpu_custom_call.1} parent=1 // pred_region
      %34 = dma.done [#allocation3], 1024
    $region13: #{tpu_custom_call.1} parent=1 // pred_fallthru
      _
    // Predicated region
    $region14: #{tpu_custom_call.1} parent=1 // pred_check
      _
    $region15: #{tpu_custom_call.1} parent=1 // pred_check_branch
      %36 = sbr.rel (0) target = $region17
    $region16: #{tpu_custom_call.1} parent=1 // pred_region
      %37 = dma.done [#allocation6], 64
    $region17: #{tpu_custom_call.1} parent=1 // pred_fallthru
      _
    %v39 = vld [vmem:[#allocation5] sm:$0xf]
    %v40 = vld [vmem:[#allocation2] sm:$0xf]
    %v41 = vld [vmem:[#allocation2 + $0x4] sm:$0xf]
    %v42 = vld [vmem:[#allocation2 + $0x8] sm:$0xf]
    %v43 = vld [vmem:[#allocation2 + $0xc] sm:$0xf]
    %v44 = vld [vmem:[#allocation2 + $0x10] sm:$0xf]
    %v45 = vld [vmem:[#allocation2 + $0x14] sm:$0xf]
    %v46 = vld [vmem:[#allocation2 + $0x18] sm:$0xf]
    %v47 = vld [vmem:[#allocation2 + $0x1c] sm:$0xf]
    %v48 = vld [vmem:[#allocation2 + $0x20] sm:$0xf]
    %v49 = vld [vmem:[#allocation2 + $0x24] sm:$0xf]
    %v50 = vld [vmem:[#allocation2 + $0x28] sm:$0xf]
    %v51 = vld [vmem:[#allocation2 + $0x2c] sm:$0xf]
    %v52 = vld [vmem:[#allocation2 + $0x30] sm:$0xf]
    %v53 = vld [vmem:[#allocation2 + $0x34] sm:$0xf]
    %v54 = vld [vmem:[#allocation2 + $0x38] sm:$0xf]
    %v55 = vld [vmem:[#allocation2 + $0x3c] sm:$0xf]
    %v56 = vpack.c.bf16 %v39, %v39
    %v57 = vunpack.c.l.bf16 %v56
    %v58 = vsub.f32 %v39, %v57
    %v59 = vpack.c.bf16 %v58, %v58
    %v76 = vunpack.c.l.b16 %v40
    %v77 = vunpack.c.l.b16 %v41
    %v78 = vunpack.c.l.b16 %v42
    %v79 = vunpack.c.l.b16 %v43
    %v80 = vunpack.c.l.b16 %v44
    %v81 = vunpack.c.l.b16 %v45
    %v82 = vunpack.c.l.b16 %v46
    %v83 = vunpack.c.l.b16 %v47
    %v84 = vunpack.c.l.b16 %v48
    %v85 = vunpack.c.l.b16 %v49
    %v86 = vunpack.c.l.b16 %v50
    %v87 = vunpack.c.l.b16 %v51
    %v88 = vunpack.c.l.b16 %v52
    %v89 = vunpack.c.l.b16 %v53
    %v90 = vunpack.c.l.b16 %v54
    %v91 = vunpack.c.l.b16 %v55
    %v92 = vpack.c.b16 %v77, %v76
    %v93 = vpack.c.b16 %v79, %v78
    %v94 = vpack.c.b16 %v81, %v80
    %v95 = vpack.c.b16 %v83, %v82
    %v96 = vpack.c.b16 %v85, %v84
    %v97 = vpack.c.b16 %v87, %v86
    %v98 = vpack.c.b16 %v89, %v88
    %v99 = vpack.c.b16 %v91, %v90
    %108 = vmatprep.subr.bf16.mxu0 0
    %109 = vmatpush1.bf16.msra.mxu0 %v92
    %110 = vmatprep.subr.bf16.mxu0 0
    %111 = vmatpush1.bf16.msra.mxu0 %v93
    %112 = vmatprep.subr.bf16.mxu0 0
    %113 = vmatpush1.bf16.msra.mxu0 %v94
    %114 = vmatprep.subr.bf16.mxu0 0
    %115 = vmatpush1.bf16.msra.mxu0 %v95
    %116 = vmatprep.subr.bf16.mxu0 0
    %117 = vmatpush1.bf16.msra.mxu0 %v96
    %118 = vmatprep.subr.bf16.mxu0 0
    %119 = vmatpush1.bf16.msra.mxu0 %v97
    %120 = vmatprep.subr.bf16.mxu0 0
    %121 = vmatpush1.bf16.msra.mxu0 %v98
    %122 = vmatprep.subr.bf16.mxu0 0
    %123 = vmatpush1.bf16.msra.mxu0 %v99
    %124 = vmatprep.subr.bf16.mxu0 0
    %125 = vmatpush1.bf16.msra.mxu0 0
    %126 = vmatprep.subr.bf16.mxu0 0
    %127 = vmatpush1.bf16.msra.mxu0 0
    %128 = vmatprep.subr.bf16.mxu0 0
    %129 = vmatpush1.bf16.msra.mxu0 0
    %130 = vmatprep.subr.bf16.mxu0 0
    %131 = vmatpush1.bf16.msra.mxu0 0
    %132 = vmatprep.subr.bf16.mxu0 0
    %133 = vmatpush1.bf16.msra.mxu0 0
    %134 = vmatprep.subr.bf16.mxu0 0
    %135 = vmatpush1.bf16.msra.mxu0 0
    %136 = vmatprep.subr.bf16.mxu0 0
    %137 = vmatpush1.bf16.msra.mxu0 0
    %138 = vmatprep.subr.bf16.mxu0 0
    %139 = vmatpush1.bf16.msra.mxu0 0
    %140 = vmatprep.mubr.bf16.mxu0 0
    %141 = vmatmul.mubr.bf16.gmra.mrb[0].mxu0 %v59
    %v142 = vpop.f32.mrb[0].mxu0
    %v143 = vadd.f32 0.0, %v142
    %v144 = vpop.f32.mrb[0].mxu0
    %v145 = vpop.f32.mrb[0].mxu0
    %v146 = vpop.f32.mrb[0].mxu0
    %147 = vdwg.mxu0
    %148 = vmatprep.subr.bf16.mxu0 0
    %149 = vmatpush1.bf16.msra.mxu0 %v92
    %150 = vmatprep.subr.bf16.mxu0 0
    %151 = vmatpush1.bf16.msra.mxu0 %v93
    %152 = vmatprep.subr.bf16.mxu0 0
    %153 = vmatpush1.bf16.msra.mxu0 %v94
    %154 = vmatprep.subr.bf16.mxu0 0
    %155 = vmatpush1.bf16.msra.mxu0 %v95
    %156 = vmatprep.subr.bf16.mxu0 0
    %157 = vmatpush1.bf16.msra.mxu0 %v96
    %158 = vmatprep.subr.bf16.mxu0 0
    %159 = vmatpush1.bf16.msra.mxu0 %v97
    %160 = vmatprep.subr.bf16.mxu0 0
    %161 = vmatpush1.bf16.msra.mxu0 %v98
    %162 = vmatprep.subr.bf16.mxu0 0
    %163 = vmatpush1.bf16.msra.mxu0 %v99
    %164 = vmatprep.subr.bf16.mxu0 0
    %165 = vmatpush1.bf16.msra.mxu0 0
    %166 = vmatprep.subr.bf16.mxu0 0
    %167 = vmatpush1.bf16.msra.mxu0 0
    %168 = vmatprep.subr.bf16.mxu0 0
    %169 = vmatpush1.bf16.msra.mxu0 0
    %170 = vmatprep.subr.bf16.mxu0 0
    %171 = vmatpush1.bf16.msra.mxu0 0
    %172 = vmatprep.subr.bf16.mxu0 0
    %173 = vmatpush1.bf16.msra.mxu0 0
    %174 = vmatprep.subr.bf16.mxu0 0
    %175 = vmatpush1.bf16.msra.mxu0 0
    %176 = vmatprep.subr.bf16.mxu0 0
    %177 = vmatpush1.bf16.msra.mxu0 0
    %178 = vmatprep.subr.bf16.mxu0 0
    %179 = vmatpush1.bf16.msra.mxu0 0
    %180 = vmatprep.mubr.bf16.mxu0 0
    %181 = vmatmul.mubr.bf16.gmra.mrb[0].mxu0 %v56
    %v182 = vpop.f32.mrb[0].mxu0
    %v183 = vadd.f32 %v143, %v182
    %v184 = vpop.f32.mrb[0].mxu0
    %v185 = vpop.f32.mrb[0].mxu0
    %v186 = vpop.f32.mrb[0].mxu0
    %187 = vdwg.mxu0
    %v188 = vmul.f32 %v183, 0.03125
    %v189 = vsub.f32 %v39, %v188
    %v190 = vmul.f32 %v189, %v189
    %v191 = vpack.c.bf16 %v190, %v190
    %v192 = vunpack.c.l.bf16 %v191
    %v193 = vsub.f32 %v190, %v192
    %v194 = vpack.c.bf16 %v193, %v193
    %195 = vmatprep.subr.bf16.mxu0 0
    %196 = vmatpush1.bf16.msra.mxu0 %v92
    %197 = vmatprep.subr.bf16.mxu0 0
    %198 = vmatpush1.bf16.msra.mxu0 %v93
    %199 = vmatprep.subr.bf16.mxu0 0
    %200 = vmatpush1.bf16.msra.mxu0 %v94
    %201 = vmatprep.subr.bf16.mxu0 0
    %202 = vmatpush1.bf16.msra.mxu0 %v95
    %203 = vmatprep.subr.bf16.mxu0 0
    %204 = vmatpush1.bf16.msra.mxu0 %v96
    %205 = vmatprep.subr.bf16.mxu0 0
    %206 = vmatpush1.bf16.msra.mxu0 %v97
    %207 = vmatprep.subr.bf16.mxu0 0
    %208 = vmatpush1.bf16.msra.mxu0 %v98
    %209 = vmatprep.subr.bf16.mxu0 0
    %210 = vmatpush1.bf16.msra.mxu0 %v99
    %211 = vmatprep.subr.bf16.mxu0 0
    %212 = vmatpush1.bf16.msra.mxu0 0
    %213 = vmatprep.subr.bf16.mxu0 0
    %214 = vmatpush1.bf16.msra.mxu0 0
    %215 = vmatprep.subr.bf16.mxu0 0
    %216 = vmatpush1.bf16.msra.mxu0 0
    %217 = vmatprep.subr.bf16.mxu0 0
    %218 = vmatpush1.bf16.msra.mxu0 0
    %219 = vmatprep.subr.bf16.mxu0 0
    %220 = vmatpush1.bf16.msra.mxu0 0
    %221 = vmatprep.subr.bf16.mxu0 0
    %222 = vmatpush1.bf16.msra.mxu0 0
    %223 = vmatprep.subr.bf16.mxu0 0
    %224 = vmatpush1.bf16.msra.mxu0 0
    %225 = vmatprep.subr.bf16.mxu0 0
    %226 = vmatpush1.bf16.msra.mxu0 0
    %227 = vmatprep.mubr.bf16.mxu0 0
    %228 = vmatmul.mubr.bf16.gmra.mrb[0].mxu0 %v194
    %v229 = vpop.f32.mrb[0].mxu0
    %v230 = vadd.f32 0.0, %v229
    %v231 = vpop.f32.mrb[0].mxu0
    %v232 = vpop.f32.mrb[0].mxu0
    %v233 = vpop.f32.mrb[0].mxu0
    %234 = vdwg.mxu0
    %235 = vmatprep.subr.bf16.mxu0 0
    %236 = vmatpush1.bf16.msra.mxu0 %v92
    %237 = vmatprep.subr.bf16.mxu0 0
    %238 = vmatpush1.bf16.msra.mxu0 %v93
    %239 = vmatprep.subr.bf16.mxu0 0
    %240 = vmatpush1.bf16.msra.mxu0 %v94
    %241 = vmatprep.subr.bf16.mxu0 0
    %242 = vmatpush1.bf16.msra.mxu0 %v95
    %243 = vmatprep.subr.bf16.mxu0 0
    %244 = vmatpush1.bf16.msra.mxu0 %v96
    %245 = vmatprep.subr.bf16.mxu0 0
    %246 = vmatpush1.bf16.msra.mxu0 %v97
    %247 = vmatprep.subr.bf16.mxu0 0
    %248 = vmatpush1.bf16.msra.mxu0 %v98
    %249 = vmatprep.subr.bf16.mxu0 0
    %250 = vmatpush1.bf16.msra.mxu0 %v99
    %251 = vmatprep.subr.bf16.mxu0 0
    %252 = vmatpush1.bf16.msra.mxu0 0
    %253 = vmatprep.subr.bf16.mxu0 0
    %254 = vmatpush1.bf16.msra.mxu0 0
    %255 = vmatprep.subr.bf16.mxu0 0
    %256 = vmatpush1.bf16.msra.mxu0 0
    %257 = vmatprep.subr.bf16.mxu0 0
    %258 = vmatpush1.bf16.msra.mxu0 0
    %259 = vmatprep.subr.bf16.mxu0 0
    %260 = vmatpush1.bf16.msra.mxu0 0
    %261 = vmatprep.subr.bf16.mxu0 0
    %262 = vmatpush1.bf16.msra.mxu0 0
    %263 = vmatprep.subr.bf16.mxu0 0
    %264 = vmatpush1.bf16.msra.mxu0 0
    %265 = vmatprep.subr.bf16.mxu0 0
    %266 = vmatpush1.bf16.msra.mxu0 0
    %267 = vmatprep.mubr.bf16.mxu0 0
    %268 = vmatmul.mubr.bf16.gmra.mrb[0].mxu0 %v191
    %v269 = vpop.f32.mrb[0].mxu0
    %v270 = vadd.f32 %v230, %v269
    %v271 = vpop.f32.mrb[0].mxu0
    %v272 = vpop.f32.mrb[0].mxu0
    %v273 = vpop.f32.mrb[0].mxu0
    %274 = vdwg.mxu0
    %v275 = vmul.f32 %v270, 0.032258064
    %v276 = vrsqrt.pop %v275
    %v277 = vmul.f32 %v275, %v276
    %vm278 = vcmp.eq.f32.partialorder %v275, inf
    %v279 = vsel %vm278, %v275, %v277
    %vm280 = vcmp.eq.f32.partialorder %v275, 0.0
    %v281 = vand.u32 %v275, 2147483648
    %v282 = vsel %vm280, %v281, %v279
    %v283 = vadd.f32 %v282, 1e-09
    %v284 = vrcp.pop %v283
    %v285 = vmul.f32 %v283, %v284
    %v286 = vsub.f32 2.0, %v285
    %v287 = vmul.f32 %v284, %v286
    %v288 = vxor.u32 %v39, 2147483648
    %v289 = vmul.f32 %v288, 1.442695
    %v290 = vpow.pop %v289
    %v291 = vadd.f32 %v290, 1.0
    %v292 = vrcp.pop %v291
    %v293 = vmul.f32 1.0, %v292
    %v294 = vmul.f32 %v189, %v287
    %v295 = vmul.f32 %v293, %v294
    %296 = vst [vmem:[#allocation7] sm:$0xf] %v295
    // Predicated region
    $region18: #{tpu_custom_call.1} parent=1 // pred_check
      _
    $region19: #{tpu_custom_call.1} parent=1 // pred_check_branch
      %298 = sbr.rel (0) target = $region21
    $region20: #{tpu_custom_call.1} parent=1 // pred_region
      %s300 = ssub.s32 64, 64
      %301 = vsyncadd [#allocation4], %s300
      %s303 = sshll.u32 [#allocation7], 4
      %s304 = int_to_ptr.vmem [resolvable:$true] %s303
      %306 = dma.vmem_to_hbm [thread:$0]  %s304, 64, %s2, [#allocation4]
    $region21: #{tpu_custom_call.1} parent=1 // pred_fallthru
      _
    // Predicated region
    $region22: #{tpu_custom_call.1} parent=1 // pred_check
      _
    $region23: #{tpu_custom_call.1} parent=1 // pred_check_branch
      %308 = sbr.rel (0) target = $region25
    $region24: #{tpu_custom_call.1} parent=1 // pred_region
      %309 = dma.done [#allocation4], 64
    $region25: #{tpu_custom_call.1} parent=1 // pred_fallthru
      _
    %310 = vsyncpa [#allocation3], 1
    %311 = vsyncpa [#allocation6], 1
    %312 = vsyncpa [#allocation4], 1

</llo_original>
